<compile_context>
chip_gen: v7x
topology: tpu7x:2x2x1
jax: 0.10.0
libtpu: 0.0.40
codegen_flags: <defaults>
</compile_context>

<pallas_src>
import numpy as np
import jax
import jax.numpy as jnp
from jax import lax
from jax.experimental import pallas as pl
from jax.experimental.pallas import tpu as pltpu


# ----------------------------- kernel -----------------------------------------------------
def embedding_kernel(ids_ref, table_ref, out_ref):
    # ids_ref:   (TT, 1)  int32    token ids for this token tile
    # table_ref: (V,  D)  float32  full embedding table (VMEM-resident across grid)
    # out_ref:   (TT, D)  float32  gathered rows
    ids = ids_ref[...]                                                  # (TT, 1)
    tt = ids.shape[0]
    v = table_ref.shape[0]
    onehot = (ids == lax.broadcasted_iota(jnp.int32, (tt, v), 1)).astype(table_ref.dtype)
    out_ref[...] = jnp.dot(onehot, table_ref[...],
                           preferred_element_type=jnp.float32).astype(out_ref.dtype)


# ----------------------------- wrapper -----------------------------------------------------
def _pick_token_tile(T):
    # Largest tile (multiple of 8, <= 512) that divides T; fall back to the full extent.
    for tile in (512, 256, 128, 64, 32, 16, 8):
        if T % tile == 0:
            return tile
    return T


def embedding_forward(weight, token_ids):
    """weight: (V, D) float32; token_ids: int array of any shape.
    Returns weight[token_ids] with shape token_ids.shape + (D,)."""
    V, D = weight.shape
    lead_shape = token_ids.shape
    ids_flat = token_ids.reshape(-1).astype(jnp.int32)
    T = ids_flat.shape[0]
    tt = _pick_token_tile(T)
    grid = (T // tt,)
    ids2d = ids_flat.reshape(T, 1)

    out = pl.pallas_call(
        embedding_kernel,
        out_shape=jax.ShapeDtypeStruct((T, D), weight.dtype),
        grid=grid,
        in_specs=[
            pl.BlockSpec((tt, 1), lambda i: (i, 0)),      # token-id column, tiled over grid
            pl.BlockSpec((V, D), lambda i: (0, 0)),       # table: resident across the grid
        ],
        out_specs=pl.BlockSpec((tt, D), lambda i: (i, 0)),
        compiler_params=pltpu.CompilerParams(
            dimension_semantics=("parallel",)),           # independent token tiles
    )(ids2d, weight)
    return out.reshape(*lead_shape, D)


# ----------------------------- main --------------------------------------------------------
if __name__ == "__main__":
    key = jax.random.PRNGKey(0)
    fwd = jax.jit(embedding_forward)

    B, S = 2, 16
    for (num_embeddings, embedding_dim) in ((64, 128), (64, 32)):
        wkey, ikey = jax.random.split(jax.random.fold_in(key, embedding_dim))
        # matches nn.init.trunc_normal_(mean=0, std=1, a=-3, b=3)
        weight = jax.random.truncated_normal(
            wkey, -3.0, 3.0, (num_embeddings, embedding_dim), dtype=jnp.float32)
        token_ids = jax.random.randint(ikey, (B, S), 0, num_embeddings, dtype=jnp.int32)

        out = jax.block_until_ready(fwd(weight, token_ids))
        assert out.shape == (B, S, embedding_dim)
        assert bool(jnp.all(jnp.isfinite(out)))

        ref = weight[token_ids]                           # plain-JAX reference
        if not np.allclose(np.asarray(out), np.asarray(ref), rtol=1e-6, atol=1e-6):
            max_err = float(jnp.max(jnp.abs(out - ref)))
            raise AssertionError(
                f"kernel/reference mismatch (V={num_embeddings}, D={embedding_dim}), "
                f"max abs err = {max_err}")

    print("KERNEL_OK")
</pallas_src>

<mosaic_0001>
module attributes {stable_mosaic.version = 11 : i64} {
  func.func @embedding_kernel(%arg0: i32, %arg1: memref<32x1xi32, #tpu.memory_space<vmem>>, %arg2: memref<64x128xf32, #tpu.memory_space<vmem>>, %arg3: memref<32x128xf32, #tpu.memory_space<vmem>>) attributes {dimension_semantics = [#tpu.dimension_semantics<parallel>], iteration_bounds = array<i64: 1>, scalar_prefetch = 0 : i64, scratch_operands = 0 : i64, tpu.core_type = #tpu.core_type<tc>, window_params = [{transform_indices = @transform_0, window_bounds = array<i64: 32, 1>}, {pipeline_mode = #tpu.pipeline_mode<synchronous>, transform_indices = @transform_1, window_bounds = array<i64: 64, 128>}, {transform_indices = @transform_2, window_bounds = array<i64: 32, 128>}]} {
    %c0 = arith.constant 0 : index
    %c0_0 = arith.constant 0 : index
    %0 = vector.load %arg1[%c0, %c0_0] : memref<32x1xi32, #tpu.memory_space<vmem>>, vector<32x1xi32>
    %1 = tpu.iota {dimensions = array<i32: 1>} : vector<32x64xi32>
    %2 = vector.broadcast %0 : vector<32x1xi32> to vector<32x64xi32>
    %3 = arith.cmpi eq, %2, %1 : vector<32x64xi32>
    %4 = arith.extui %3 : vector<32x64xi1> to vector<32x64xi32>
    %5 = arith.sitofp %4 : vector<32x64xi32> to vector<32x64xf32>
    %c0_1 = arith.constant 0 : index
    %c0_2 = arith.constant 0 : index
    %6 = vector.load %arg2[%c0_1, %c0_2] : memref<64x128xf32, #tpu.memory_space<vmem>>, vector<64x128xf32>
    %cst = arith.constant dense<0.000000e+00> : vector<32x128xf32>
    %7 = tpu.matmul %5, %6, %cst {dimension_numbers = #tpu.dot_dimension_numbers<[1], [0], [0], [1], [0, 0, 1, 1], [], []>} : vector<32x64xf32>, vector<64x128xf32>, vector<32x128xf32> -> vector<32x128xf32>
    %c0_3 = arith.constant 0 : index
    %c0_4 = arith.constant 0 : index
    %8 = vector.load %arg3[%c0_3, %c0_4] : memref<32x128xf32, #tpu.memory_space<vmem>>, vector<32x128xf32>
    tpu.vector_store %arg3[%c0_3, %c0_4], %7 {strides = array<i32>} : memref<32x128xf32, #tpu.memory_space<vmem>>, vector<32x128xf32>,
    return
  }
  func.func @transform_0(%arg0: i32) -> (i32, i32) {
    %c0_i32 = arith.constant 0 : i32
    %c0_i32_0 = arith.constant 0 : i32
    return %arg0, %c0_i32 : i32, i32
  }
  func.func @transform_1(%arg0: i32) -> (i32, i32) {
    %c0_i32 = arith.constant 0 : i32
    %c0_i32_0 = arith.constant 0 : i32
    %c0_i32_1 = arith.constant 0 : i32
    return %c0_i32, %c0_i32_0 : i32, i32
  }
  func.func @transform_2(%arg0: i32) -> (i32, i32) {
    %c0_i32 = arith.constant 0 : i32
    %c0_i32_0 = arith.constant 0 : i32
    return %arg0, %c0_i32 : i32, i32
  }
}

</mosaic_0001>

<llo_original>
// kernel: embedding_forward.1
$region0: #{embedding_forward.1}
  #allocation0 [shape = 'u32[]', space=smem, size = 0x4, offset = 0x4, fixed_abs, tag = 'smem constant byte address 0x4 - core index']
  #allocation1 [shape = 'u32[144,128]{1,0:T(1,128)}', space=vmem, size = 0x12000, scoped, tag = 'internal scratch']
  %s0 = inlined_call_operand.vmem [shape: s32[32,1], index: 0, kind: input, shape index: {}]
  %s1 = inlined_call_operand.hbm [shape: f32[64,128], index: 1, kind: input, shape index: {}]
  %s2 = inlined_call_operand.hbm [shape: f32[32,128], index: 2, kind: output, shape index: {}]
  %s3 = sld [smem:[#allocation0]]
  $region22: #{embedding_forward.1} parent=0
    _
  %s5 = ssub.s32 1, %s3
  %s6 = scalar_select 0, %s5, %s3
  $region1: #{embedding_forward.1} parent=0
    #allocation2 [shape = 'u8[32768]{0}', space=vmem, size = 0x8000, scoped, tag = 'input window, operand 1, single buffered']
    #allocation3 [shape = 's32[1]{0}', space=sflag, size = 0x4, scoped, tag = 'scoped memory for embedding_forward.1']
    #allocation4 [shape = 's32[1]{0}', space=sflag, size = 0x4, scoped, tag = 'scoped memory for embedding_forward.1']
    #allocation5 [shape = 'u8[16384]{0}', space=vmem, size = 0x4000, scoped, tag = 'output window, operand 0, single buffered']
    %7 = vsyncpa [#allocation3], 0
    %8 = vsyncpa [#allocation4], 0
    // Predicated region
    $region2: #{embedding_forward.1} parent=1 // pred_check
      _
    $region3: #{embedding_forward.1} parent=1 // pred_check_branch
      %10 = sbr.rel (0) target = $region5
    $region4: #{embedding_forward.1} parent=1 // pred_region
      _
    $region5: #{embedding_forward.1} parent=1 // pred_fallthru
      _
    // Predicated region
    $region6: #{embedding_forward.1} parent=1 // pred_check
      _
    $region7: #{embedding_forward.1} parent=1 // pred_check_branch
      %12 = sbr.rel (0) target = $region9
    $region8: #{embedding_forward.1} parent=1 // pred_region
      %s14 = ssub.s32 1024, 1024
      %15 = vsyncadd [#allocation3], %s14
      %s16 = sshll.u32 [#allocation2], 4
      %s17 = int_to_ptr.vmem [resolvable:$true] %s16
      %22 = dma.hbm_to_vmem [thread:$0]  %s1, 1024, %s17, [#allocation3], 128, 128, 8
    $region9: #{embedding_forward.1} parent=1 // pred_fallthru
      _
    // Predicated region
    $region10: #{embedding_forward.1} parent=1 // pred_check
      _
    $region11: #{embedding_forward.1} parent=1 // pred_check_branch
      %24 = sbr.rel (0) target = $region13
    $region12: #{embedding_forward.1} parent=1 // pred_region
      %25 = dma.done [#allocation3], 1024
    $region13: #{embedding_forward.1} parent=1 // pred_fallthru
      _
    %v26 = vld [vmem:[%s0] sm:$0xff]
    %v27 = vld [vmem:[%s0 + $0x8] sm:$0xff]
    %v28 = vld [vmem:[%s0 + $0x10] sm:$0xff]
    %v29 = vld [vmem:[%s0 + $0x18] sm:$0xff]
    %v30 = vlaneseq
    %v31 = vand.u32 %v30, 127
    %32 = vset.pattern.permute.xlu0 0
    %33 = vperm.xlu0 %32, %v26
    %v34 = vpop.permute.xlu0 %33
    %35 = vset.pattern.permute.xlu0 0
    %36 = vperm.xlu0 %35, %v27
    %v37 = vpop.permute.xlu0 %36
    %38 = vset.pattern.permute.xlu0 0
    %39 = vperm.xlu0 %38, %v28
    %v40 = vpop.permute.xlu0 %39
    %41 = vset.pattern.permute.xlu0 0
    %42 = vperm.xlu0 %41, %v29
    %v43 = vpop.permute.xlu0 %42
    %vm44 = vcmp.eq.s32.totalorder %v34, %v31
    %vm45 = vcmp.eq.s32.totalorder %v37, %v31
    %vm46 = vcmp.eq.s32.totalorder %v40, %v31
    %vm47 = vcmp.eq.s32.totalorder %v43, %v31
    %v48 = vsel %vm44, 1, 0
    %v49 = vsel %vm45, 1, 0
    %v50 = vsel %vm46, 1, 0
    %v51 = vsel %vm47, 1, 0
    %v52 = vcvt.s32.f32 %v48
    %v53 = vcvt.s32.f32 %v49
    %v54 = vcvt.s32.f32 %v50
    %v55 = vcvt.s32.f32 %v51
    %v56 = vld [vmem:[#allocation2] sm:$0xff]
    %v57 = vld [vmem:[#allocation2 + $0x8] sm:$0xff]
    %v58 = vld [vmem:[#allocation2 + $0x10] sm:$0xff]
    %v59 = vld [vmem:[#allocation2 + $0x18] sm:$0xff]
    %v60 = vld [vmem:[#allocation2 + $0x20] sm:$0xff]
    %v61 = vld [vmem:[#allocation2 + $0x28] sm:$0xff]
    %v62 = vld [vmem:[#allocation2 + $0x30] sm:$0xff]
    %v63 = vld [vmem:[#allocation2 + $0x38] sm:$0xff]
    %vm64 = vcmask 523264
    %v66 = vsel %vm64, %v52, 0
    %v69 = vsel %vm64, %v53, 0
    %v72 = vsel %vm64, %v54, 0
    %v75 = vsel %vm64, %v55, 0
    %77 = vmatprep.subr.mxu0 0.0
    %78 = vmatpush1.msra.mxu0 %v56
    %79 = vmatprep.subr.mxu0 0.0
    %80 = vmatpush1.msra.mxu0 %v57
    %81 = vmatprep.subr.mxu0 0.0
    %82 = vmatpush1.msra.mxu0 %v58
    %83 = vmatprep.subr.mxu0 0.0
    %84 = vmatpush1.msra.mxu0 %v59
    %85 = vmatprep.subr.mxu0 0.0
    %86 = vmatpush1.msra.mxu0 %v60
    %87 = vmatprep.subr.mxu0 0.0
    %88 = vmatpush1.msra.mxu0 %v61
    %89 = vmatprep.subr.mxu0 0.0
    %90 = vmatpush1.msra.mxu0 %v62
    %91 = vmatprep.subr.mxu0 0.0
    %92 = vmatpush1.msra.mxu0 %v63
    %93 = vmatprep.subr.mxu0 0.0
    %94 = vmatpush1.msra.mxu0 0.0
    %95 = vmatprep.subr.mxu0 0.0
    %96 = vmatpush1.msra.mxu0 0.0
    %97 = vmatprep.subr.mxu0 0.0
    %98 = vmatpush1.msra.mxu0 0.0
    %99 = vmatprep.subr.mxu0 0.0
    %100 = vmatpush1.msra.mxu0 0.0
    %101 = vmatprep.subr.mxu0 0.0
    %102 = vmatpush1.msra.mxu0 0.0
    %103 = vmatprep.subr.mxu0 0.0
    %104 = vmatpush1.msra.mxu0 0.0
    %105 = vmatprep.subr.mxu0 0.0
    %106 = vmatpush1.msra.mxu0 0.0
    %107 = vmatprep.subr.mxu0 0.0
    %108 = vmatpush1.msra.mxu0 0.0
    %109 = vmatprep.subr.mxu0 0.0
    %110 = vmatpush1.msra.mxu0 0.0
    %111 = vmatprep.subr.mxu0 0.0
    %112 = vmatpush1.msra.mxu0 0.0
    %113 = vmatprep.subr.mxu0 0.0
    %114 = vmatpush1.msra.mxu0 0.0
    %115 = vmatprep.subr.mxu0 0.0
    %116 = vmatpush1.msra.mxu0 0.0
    %117 = vmatprep.subr.mxu0 0.0
    %118 = vmatpush1.msra.mxu0 0.0
    %119 = vmatprep.subr.mxu0 0.0
    %120 = vmatpush1.msra.mxu0 0.0
    %121 = vmatprep.subr.mxu0 0.0
    %122 = vmatpush1.msra.mxu0 0.0
    %123 = vmatprep.subr.mxu0 0.0
    %124 = vmatpush1.msra.mxu0 0.0
    %125 = vmatprep.subr.mxu0 0.0
    %126 = vmatpush1.msra.mxu0 0.0
    %127 = vmatprep.subr.mxu0 0.0
    %128 = vmatpush1.msra.mxu0 0.0
    %129 = vmatprep.subr.mxu0 0.0
    %130 = vmatpush1.msra.mxu0 0.0
    %131 = vmatprep.subr.mxu0 0.0
    %132 = vmatpush1.msra.mxu0 0.0
    %133 = vmatprep.subr.mxu0 0.0
    %134 = vmatpush1.msra.mxu0 0.0
    %135 = vmatprep.subr.mxu0 0.0
    %136 = vmatpush1.msra.mxu0 0.0
    %137 = vmatprep.subr.mxu0 0.0
    %138 = vmatpush1.msra.mxu0 0.0
    %139 = vmatprep.subr.mxu0 0.0
    %140 = vmatpush1.msra.mxu0 0.0
    %141 = vmatprep.mubr.f32.mxu0 0.0
    %142 = vmatmul.mubr.f32.gmra.mrb[0].mxu0 %v66
    %v143 = vpop.f32.mrb[0].mxu0
    %v144 = vadd.f32 0.0, %v143
    %v145 = vpop.f32.mrb[0].mxu0
    %146 = vmatprep.mubr.f32.mxu0 0.0
    %147 = vmatmul.mubr.f32.gmra.mrb[0].mxu0 %v69
    %v148 = vpop.f32.mrb[0].mxu0
    %v149 = vadd.f32 0.0, %v148
    %v150 = vpop.f32.mrb[0].mxu0
    %151 = vmatprep.mubr.f32.mxu0 0.0
    %152 = vmatmul.mubr.f32.gmra.mrb[0].mxu0 %v72
    %v153 = vpop.f32.mrb[0].mxu0
    %v154 = vadd.f32 0.0, %v153
    %v155 = vpop.f32.mrb[0].mxu0
    %156 = vmatprep.mubr.f32.mxu0 0.0
    %157 = vmatmul.mubr.f32.gmra.mrb[0].mxu0 %v75
    %v158 = vpop.f32.mrb[0].mxu0
    %v159 = vadd.f32 0.0, %v158
    %v160 = vpop.f32.mrb[0].mxu0
    %161 = vdwg.mxu0
    %162 = vst [vmem:[#allocation5] sm:$0xff] %v144
    %163 = vst [vmem:[#allocation5 + $0x8] sm:$0xff] %v149
    %164 = vst [vmem:[#allocation5 + $0x10] sm:$0xff] %v154
    %165 = vst [vmem:[#allocation5 + $0x18] sm:$0xff] %v159
    // Predicated region
    $region14: #{embedding_forward.1} parent=1 // pred_check
      _
    $region15: #{embedding_forward.1} parent=1 // pred_check_branch
      %167 = sbr.rel (0) target = $region17
    $region16: #{embedding_forward.1} parent=1 // pred_region
      %s169 = ssub.s32 512, 512
      %170 = vsyncadd [#allocation4], %s169
      %s171 = sshll.u32 [#allocation5], 4
      %s172 = int_to_ptr.vmem [resolvable:$true] %s171
      %177 = dma.vmem_to_hbm [thread:$0]  %s172, 512, %s2, [#allocation4], 128, 128, 8
    $region17: #{embedding_forward.1} parent=1 // pred_fallthru
      _
    // Predicated region
    $region18: #{embedding_forward.1} parent=1 // pred_check
      _
    $region19: #{embedding_forward.1} parent=1 // pred_check_branch
      %179 = sbr.rel (0) target = $region21
    $region20: #{embedding_forward.1} parent=1 // pred_region
      %180 = dma.done [#allocation4], 512
    $region21: #{embedding_forward.1} parent=1 // pred_fallthru
      _
    %181 = vsyncpa [#allocation3], 1
    %182 = vsyncpa [#allocation4], 1

</llo_original>
